<compile_context>
chip_gen: v7x
topology: tpu7x:2x2x1
jax: 0.10.0
libtpu: 0.0.40
codegen_flags: <defaults>
</compile_context>

<pallas_src>
import jax
import jax.numpy as jnp
from jax.experimental import pallas as pl
from jax.experimental.pallas import tpu as pltpu

_LANES = 128        # vreg lane width -- last dim of the slab
_TILE_ROWS = 4096   # 4096 x 128 x f32 = 2 MiB per block


def _scale_kernel(w_ref, x_ref, o_ref):
    # w_ref: (1, 1) f32 in SMEM (whole weight, fetched once)
    # x_ref, o_ref: lane-dense (tile_rows, 128) f32 tiles in VMEM
    o_ref[...] = (x_ref[...] * w_ref[0, 0]).astype(o_ref.dtype)


def _run(slab, w2d, tile_rows, grid, semantics):
    nbytes = slab.size * slab.dtype.itemsize
    return pl.pallas_call(
        _scale_kernel,
        out_shape=jax.ShapeDtypeStruct(slab.shape, slab.dtype),
        grid=(grid,),
        in_specs=[
            pl.BlockSpec(memory_space=pltpu.MemorySpace.SMEM),    # weight scalar
            pl.BlockSpec((tile_rows, _LANES), lambda i: (i, 0)),  # x tile
        ],
        out_specs=pl.BlockSpec((tile_rows, _LANES), lambda i: (i, 0)),
        compiler_params=pltpu.CompilerParams(
            dimension_semantics=(semantics,),
            vmem_limit_bytes=32 * 1024 * 1024,
        ),
        cost_estimate=pl.CostEstimate(
            flops=slab.size, transcendentals=0, bytes_accessed=2 * nbytes),
    )(w2d, slab)


def net_forward(x, w):
    """Net.forward: multiply every element of x by w[0, 0] (fc1, no bias)."""
    orig_shape = x.shape
    flat = x.reshape(-1)                    # metadata-only
    n = flat.shape[0]

    rows = pl.cdiv(n, _LANES)
    padded_n = rows * _LANES
    if padded_n != n:
        # Minimal pad: only up to the next multiple of 128.
        flat = jnp.pad(flat, (0, padded_n - n))
    slab = flat.reshape(rows, _LANES)       # metadata-only when n % 128 == 0
    w2d = w.reshape(1, 1)

    tile_rows = min(_TILE_ROWS, rows)       # multiple of 8, or == full dim
    grid = pl.cdiv(rows, tile_rows)         # ragged last block masked by Pallas

    if grid == 1:
        out_slab = _run(slab, w2d, tile_rows, grid, pltpu.ARBITRARY)
    else:
        core_parallel = getattr(pltpu, "CORE_PARALLEL", None)
        if core_parallel is not None:
            try:
                out_slab = _run(slab, w2d, tile_rows, grid, core_parallel)
            except Exception:
                out_slab = _run(slab, w2d, tile_rows, grid, pltpu.PARALLEL)
        else:
            out_slab = _run(slab, w2d, tile_rows, grid, pltpu.PARALLEL)

    if padded_n != n:
        return out_slab.reshape(-1)[:n].reshape(orig_shape)
    return out_slab.reshape(orig_shape)     # metadata-only


if __name__ == "__main__":
    key = jax.random.PRNGKey(0)
    kx, kw, kb = jax.random.split(key, 3)

    # nn.Linear(1, 1, bias=False): input (N, 1), weight (1, 1).
    w = jax.random.uniform(kw, (1, 1), dtype=jnp.float32, minval=-1.0, maxval=1.0)

    # Small case: exercises the pad/crop (n % 128 != 0), single-block path.
    x = jax.random.normal(kx, (8, 1), dtype=jnp.float32)
    out = jax.block_until_ready(net_forward(x, w))
    ref = x @ w.T
    assert out.shape == x.shape
    assert jnp.allclose(out, ref, atol=1e-6, rtol=1e-6)

    # Larger case: n % 128 == 0 (zero-copy reshape in/out), multi-block grid
    # with a ragged final block (5000 rows, 4096-row tiles -> grid = 2).
    x_big = jax.random.normal(kb, (640000, 1), dtype=jnp.float32)
    out_big = jax.block_until_ready(net_forward(x_big, w))
    ref_big = x_big @ w.T
    assert out_big.shape == x_big.shape
    assert jnp.allclose(out_big, ref_big, atol=1e-6, rtol=1e-6)

    print("KERNEL_OK")
</pallas_src>

<mosaic_0001>
module attributes {stable_mosaic.version = 11 : i64} {
  func.func @_scale_kernel(%arg0: i32, %arg1: memref<1x1xf32, #tpu.memory_space<smem>>, %arg2: memref<1x128xf32, #tpu.memory_space<vmem>>, %arg3: memref<1x128xf32, #tpu.memory_space<vmem>>) attributes {dimension_semantics = [#tpu.dimension_semantics<arbitrary>], iteration_bounds = array<i64: 1>, scalar_prefetch = 0 : i64, scratch_operands = 0 : i64, tpu.core_type = #tpu.core_type<tc>, window_params = [{transform_indices = @transform_0, window_bounds = array<i64: 1, 1>}, {transform_indices = @transform_1, window_bounds = array<i64: 1, 128>}, {transform_indices = @transform_2, window_bounds = array<i64: 1, 128>}]} {
    %c0 = arith.constant 0 : index
    %c0_0 = arith.constant 0 : index
    %0 = vector.load %arg2[%c0, %c0_0] : memref<1x128xf32, #tpu.memory_space<vmem>>, vector<1x128xf32>
    %c0_1 = arith.constant 0 : index
    %c0_2 = arith.constant 0 : index
    %1 = memref.load %arg1[%c0_1, %c0_2] : memref<1x1xf32, #tpu.memory_space<smem>>
    %2 = vector.broadcast %1 : f32 to vector<1x128xf32>
    %3 = arith.mulf %0, %2 : vector<1x128xf32>
    %c0_3 = arith.constant 0 : index
    %c0_4 = arith.constant 0 : index
    %4 = vector.load %arg3[%c0_3, %c0_4] : memref<1x128xf32, #tpu.memory_space<vmem>>, vector<1x128xf32>
    tpu.vector_store %arg3[%c0_3, %c0_4], %3 {strides = array<i32>} : memref<1x128xf32, #tpu.memory_space<vmem>>, vector<1x128xf32>,
    return
  }
  func.func @transform_0(%arg0: i32) -> (i32, i32) {
    %c0_i32 = arith.constant 0 : i32
    %c0_i32_0 = arith.constant 0 : i32
    %c0_i32_1 = arith.constant 0 : i32
    return %c0_i32, %c0_i32_0 : i32, i32
  }
  func.func @transform_1(%arg0: i32) -> (i32, i32) {
    %c0_i32 = arith.constant 0 : i32
    %c0_i32_0 = arith.constant 0 : i32
    return %arg0, %c0_i32 : i32, i32
  }
  func.func @transform_2(%arg0: i32) -> (i32, i32) {
    %c0_i32 = arith.constant 0 : i32
    %c0_i32_0 = arith.constant 0 : i32
    return %arg0, %c0_i32 : i32, i32
  }
}

</mosaic_0001>

<llo_original>
// kernel: tpu_custom_call.1
$region0: #{tpu_custom_call.1}
  #allocation0 [shape = 'u32[]', space=smem, size = 0x4, offset = 0x4, fixed_abs, tag = 'smem constant byte address 0x4 - core index']
  #allocation1 [shape = 'u32[144,128]{1,0:T(1,128)}', space=vmem, size = 0x12000, scoped, tag = 'internal scratch']
  #allocation2 [shape = 'f32[1,1]{1,0:T(1,128)S(6)}', space=smem, size = 0x200, scoped, tag = 'scoped memory for tpu_custom_call.1']
  %s0 = inlined_call_operand.<no memory space> [shape: f32[1,1], index: 0, kind: input, shape index: {}]
  %s1 = inlined_call_operand.vmem [shape: f32[1,128], index: 1, kind: input, shape index: {}]
  %s2 = inlined_call_operand.hbm [shape: f32[1,128], index: 2, kind: output, shape index: {}]
  %s3 = sld [smem:[#allocation0]]
  $region18: #{tpu_custom_call.1} parent=0
    _
  %s5 = ssub.s32 1, %s3
  %s6 = scalar_select 0, %s5, %s3
  %7 = sst [smem:[#allocation2]] %s0
  $region1: #{tpu_custom_call.1} parent=0
    #allocation3 [shape = 'u8[512]{0}', space=vmem, size = 0x400, scoped, tag = 'output window, operand 0, single buffered']
    #allocation4 [shape = 's32[1]{0}', space=sflag, size = 0x4, scoped, tag = 'scoped memory for tpu_custom_call.1']
    %8 = vsyncpa [#allocation4], 0
    // Predicated region
    $region2: #{tpu_custom_call.1} parent=1 // pred_check
      _
    $region3: #{tpu_custom_call.1} parent=1 // pred_check_branch
      %10 = sbr.rel (0) target = $region5
    $region4: #{tpu_custom_call.1} parent=1 // pred_region
      _
    $region5: #{tpu_custom_call.1} parent=1 // pred_fallthru
      _
    // Predicated region
    $region6: #{tpu_custom_call.1} parent=1 // pred_check
      _
    $region7: #{tpu_custom_call.1} parent=1 // pred_check_branch
      %12 = sbr.rel (0) target = $region9
    $region8: #{tpu_custom_call.1} parent=1 // pred_region
      _
    $region9: #{tpu_custom_call.1} parent=1 // pred_fallthru
      _
    %v13 = vld [vmem:[%s1] sm:$0x1]
    %s14 = sld [smem:[#allocation2]]
    %v15 = vstv %s14
    %v16 = vmul.f32 %v13, %v15
    %17 = vst [vmem:[#allocation3] sm:$0x1] %v16
    // Predicated region
    $region10: #{tpu_custom_call.1} parent=1 // pred_check
      _
    $region11: #{tpu_custom_call.1} parent=1 // pred_check_branch
      %19 = sbr.rel (0) target = $region13
    $region12: #{tpu_custom_call.1} parent=1 // pred_region
      %s21 = ssub.s32 16, 16
      %22 = vsyncadd [#allocation4], %s21
      %s24 = sshll.u32 [#allocation3], 4
      %s25 = int_to_ptr.vmem [resolvable:$true] %s24
      %27 = dma.vmem_to_hbm [thread:$0]  %s25, 16, %s2, [#allocation4]
    $region13: #{tpu_custom_call.1} parent=1 // pred_fallthru
      _
    // Predicated region
    $region14: #{tpu_custom_call.1} parent=1 // pred_check
      _
    $region15: #{tpu_custom_call.1} parent=1 // pred_check_branch
      %29 = sbr.rel (0) target = $region17
    $region16: #{tpu_custom_call.1} parent=1 // pred_region
      %30 = dma.done [#allocation4], 16
    $region17: #{tpu_custom_call.1} parent=1 // pred_fallthru
      _
    %31 = vsyncpa [#allocation4], 1

</llo_original>
